<compile_context>
chip_gen: v5e
topology: v5e:2x2
jax: 0.10.0
libtpu: 0.0.40
codegen_flags: <defaults>
</compile_context>

<pallas_src>
import functools

import jax
import jax.numpy as jnp
from jax.experimental import pallas as pl
from jax.experimental.pallas import tpu as pltpu

BN_EPS = 1e-5
LANE = 128      # feature padding granularity (could be raised to 256 on v6e/v7x)
SUBLANE = 8


def _round_up(v, m):
    return (v + m - 1) // m * m


def _bn_scale_shift(x, gamma, beta, eps=BN_EPS):
    """Training-mode BatchNorm1d folded into a per-feature affine: x*scale + shift."""
    mean = jnp.mean(x, axis=0, keepdims=True)
    var = jnp.mean(jnp.square(x - mean), axis=0, keepdims=True)  # biased variance
    scale = gamma * jax.lax.rsqrt(var + eps)
    shift = beta - mean * scale
    return scale, shift


# ----------------- stage 1: BN1 + ReLU, fused (shortcut | Linear1) matmul -----------------

def _stage1_kernel(x_ref, s1_ref, t1_ref, wf_ref, bf_ref, hp_ref):
    # BN1 + ReLU in f32 (per-feature affine precomputed in the wrapper).
    h = jnp.maximum(x_ref[...].astype(jnp.float32) * s1_ref[...] + t1_ref[...], 0.0)
    # One wide bf16 MXU matmul: columns [0, out_p) = shortcut, [out_p, 2*out_p) = Linear1.
    hp = jnp.dot(h.astype(jnp.bfloat16), wf_ref[...],
                 preferred_element_type=jnp.float32) + bf_ref[...]
    hp_ref[...] = hp


# ----------------- stage 2: BN2 + ReLU, Linear2, add residual -----------------------------

def _stage2_kernel(hp_ref, s2_ref, t2_ref, w2_ref, b2_ref, o_ref, *, out_p):
    hp = hp_ref[...]
    residual = hp[:, :out_p]          # static slice on a 128-lane boundary
    h1 = hp[:, out_p:]
    h2 = jnp.maximum(h1 * s2_ref[...] + t2_ref[...], 0.0)
    y = jnp.dot(h2.astype(jnp.bfloat16), w2_ref[...],
                preferred_element_type=jnp.float32) + b2_ref[...] + residual
    o_ref[...] = y.astype(o_ref.dtype)


def _vmem_limit(*nbytes):
    est = 2 * int(sum(nbytes)) + (1 << 20)   # 2x for double buffering + slack
    return int(min(48 * 1024 * 1024, max(8 * 1024 * 1024, est)))


def resblock_forward(x, params, *, block_m=512):
    assert block_m % SUBLANE == 0
    n, in_features = x.shape
    out_features = params["w2_t"].shape[1]
    in_p = _round_up(in_features, LANE)
    out_p = _round_up(out_features, LANE)

    bm = min(block_m, _round_up(n, SUBLANE))
    n_p = _round_up(n, bm)
    grid_m = n_p // bm

    f32 = jnp.float32
    x32 = x.astype(f32)

    # BN1 (training-mode stats over the real batch) as per-feature scale/shift.
    s1, t1 = _bn_scale_shift(x32, params["g1"], params["be1"])
    s1 = jnp.pad(s1, ((0, 0), (0, in_p - in_features)))
    t1 = jnp.pad(t1, ((0, 0), (0, in_p - in_features)))

    # Fused (shortcut | Linear1) weight, bf16, zero-padded to lane multiples.
    pad_io = ((0, in_p - in_features), (0, out_p - out_features))
    pad_o = ((0, 0), (0, out_p - out_features))
    wf = jnp.concatenate(
        [jnp.pad(params["wsc_t"], pad_io), jnp.pad(params["w1_t"], pad_io)],
        axis=1).astype(jnp.bfloat16)
    bf = jnp.concatenate(
        [jnp.pad(params["bsc"], pad_o), jnp.pad(params["b1"], pad_o)],
        axis=1).astype(f32)

    x_p = jnp.pad(x, ((0, n_p - n), (0, in_p - in_features)))

    hp = pl.pallas_call(
        _stage1_kernel,
        out_shape=jax.ShapeDtypeStruct((n_p, 2 * out_p), f32),
        grid=(grid_m,),
        in_specs=[
            pl.BlockSpec((bm, in_p), lambda i: (i, 0)),
            pl.BlockSpec((1, in_p), lambda i: (0, 0)),
            pl.BlockSpec((1, in_p), lambda i: (0, 0)),
            pl.BlockSpec((in_p, 2 * out_p), lambda i: (0, 0)),
            pl.BlockSpec((1, 2 * out_p), lambda i: (0, 0)),
        ],
        out_specs=pl.BlockSpec((bm, 2 * out_p), lambda i: (i, 0)),
        compiler_params=pltpu.CompilerParams(
            dimension_semantics=("parallel",),
            vmem_limit_bytes=_vmem_limit(
                bm * in_p * x.dtype.itemsize,
                in_p * 2 * out_p * 2,
                bm * 2 * out_p * 4,
            ),
        ),
    )(x_p, s1, t1, wf, bf)

    # BN2 statistics: cross-tile reduction over the stage-1 h1 output (valid
    # rows/columns only), done in the wrapper so the batch grid stays "parallel".
    h1_valid = hp[:n, out_p:out_p + out_features]
    s2, t2 = _bn_scale_shift(h1_valid, params["g2"], params["be2"])
    s2 = jnp.pad(s2, pad_o)
    t2 = jnp.pad(t2, pad_o)

    w2 = jnp.pad(params["w2_t"],
                 ((0, out_p - out_features), (0, out_p - out_features))
                 ).astype(jnp.bfloat16)
    b2 = jnp.pad(params["b2"], pad_o).astype(f32)

    y_p = pl.pallas_call(
        functools.partial(_stage2_kernel, out_p=out_p),
        out_shape=jax.ShapeDtypeStruct((n_p, out_p), x.dtype),
        grid=(grid_m,),
        in_specs=[
            pl.BlockSpec((bm, 2 * out_p), lambda i: (i, 0)),
            pl.BlockSpec((1, out_p), lambda i: (0, 0)),
            pl.BlockSpec((1, out_p), lambda i: (0, 0)),
            pl.BlockSpec((out_p, out_p), lambda i: (0, 0)),
            pl.BlockSpec((1, out_p), lambda i: (0, 0)),
        ],
        out_specs=pl.BlockSpec((bm, out_p), lambda i: (i, 0)),
        compiler_params=pltpu.CompilerParams(
            dimension_semantics=("parallel",),
            vmem_limit_bytes=_vmem_limit(
                bm * 2 * out_p * 4,
                out_p * out_p * 2,
                bm * out_p * x.dtype.itemsize,
            ),
        ),
    )(hp, s2, t2, w2, b2)

    return y_p[:n, :out_features]


def resblock_reference(x, params):
    """Pure-JAX reference mirroring the PyTorch forward (bf16 matmul operands)."""
    x32 = x.astype(jnp.float32)
    s1, t1 = _bn_scale_shift(x32, params["g1"], params["be1"])
    h = jnp.maximum(x32 * s1 + t1, 0.0)
    hb = h.astype(jnp.bfloat16)
    residual = jnp.dot(hb, params["wsc_t"].astype(jnp.bfloat16),
                       preferred_element_type=jnp.float32) + params["bsc"]
    h1 = jnp.dot(hb, params["w1_t"].astype(jnp.bfloat16),
                 preferred_element_type=jnp.float32) + params["b1"]
    s2, t2 = _bn_scale_shift(h1, params["g2"], params["be2"])
    h2 = jnp.maximum(h1 * s2 + t2, 0.0)
    y = jnp.dot(h2.astype(jnp.bfloat16), params["w2_t"].astype(jnp.bfloat16),
                preferred_element_type=jnp.float32) + params["b2"] + residual
    return y.astype(x.dtype)


def init_params(key, in_features, out_features):
    ks = jax.random.split(key, 6)
    # Linear weights stored pre-transposed as (in, out); biases / BN params as (1, F).
    return {
        "g1": jnp.ones((1, in_features), jnp.float32),
        "be1": jnp.zeros((1, in_features), jnp.float32),
        "wsc_t": jax.random.normal(ks[0], (in_features, out_features), jnp.float32) * 0.1,
        "bsc": jax.random.normal(ks[1], (1, out_features), jnp.float32) * 0.1,
        "w1_t": jax.random.normal(ks[2], (in_features, out_features), jnp.float32) * 0.1,
        "b1": jax.random.normal(ks[3], (1, out_features), jnp.float32) * 0.1,
        "g2": jnp.ones((1, out_features), jnp.float32),
        "be2": jnp.zeros((1, out_features), jnp.float32),
        "w2_t": jax.random.normal(ks[4], (out_features, out_features), jnp.float32) * 0.1,
        "b2": jax.random.normal(ks[5], (1, out_features), jnp.float32) * 0.1,
    }


if __name__ == "__main__":
    # TODO(synk): shake-shake / shake-drop / dropout branches need training-time RNG
    # and are disabled in this config; only the deterministic path is kernelized.
    batch, in_features, out_features = 50, 32, 64   # exercises batch padding + 4-tile grid
    key = jax.random.PRNGKey(0)
    kx, kp = jax.random.split(key)
    x = jax.random.normal(kx, (batch, in_features), jnp.float32)
    params = init_params(kp, in_features, out_features)

    out = resblock_forward(x, params, block_m=16)   # small tile so the demo grid is >1
    out = jax.block_until_ready(out)

    ref = resblock_reference(x, params)
    assert out.shape == (batch, out_features)
    assert jnp.allclose(out, ref, atol=1e-2, rtol=1e-2), "mismatch vs pure-JAX reference"
    print("KERNEL_OK")
</pallas_src>

<mosaic_0001>
module attributes {stable_mosaic.version = 11 : i64} {
  func.func @_stage1_kernel(%arg0: i32, %arg1: memref<16x128xf32, #tpu.memory_space<vmem>>, %arg2: memref<1x128xf32, #tpu.memory_space<vmem>>, %arg3: memref<1x128xf32, #tpu.memory_space<vmem>>, %arg4: memref<128x256xbf16, #tpu.memory_space<vmem>>, %arg5: memref<1x256xf32, #tpu.memory_space<vmem>>, %arg6: memref<16x256xf32, #tpu.memory_space<vmem>>) attributes {dimension_semantics = [#tpu.dimension_semantics<parallel>], iteration_bounds = array<i64: 4>, scalar_prefetch = 0 : i64, scratch_operands = 0 : i64, tpu.core_type = #tpu.core_type<tc>, window_params = [{transform_indices = @transform_0, window_bounds = array<i64: 16, 128>}, {pipeline_mode = #tpu.pipeline_mode<synchronous>, transform_indices = @transform_1, window_bounds = array<i64: 1, 128>}, {pipeline_mode = #tpu.pipeline_mode<synchronous>, transform_indices = @transform_2, window_bounds = array<i64: 1, 128>}, {pipeline_mode = #tpu.pipeline_mode<synchronous>, transform_indices = @transform_3, window_bounds = array<i64: 128, 256>}, {pipeline_mode = #tpu.pipeline_mode<synchronous>, transform_indices = @transform_4, window_bounds = array<i64: 1, 256>}, {transform_indices = @transform_5, window_bounds = array<i64: 16, 256>}]} {
    %c0 = arith.constant 0 : index
    %c0_0 = arith.constant 0 : index
    %0 = vector.load %arg1[%c0, %c0_0] : memref<16x128xf32, #tpu.memory_space<vmem>>, vector<16x128xf32>
    %c0_1 = arith.constant 0 : index
    %c0_2 = arith.constant 0 : index
    %1 = vector.load %arg2[%c0_1, %c0_2] : memref<1x128xf32, #tpu.memory_space<vmem>>, vector<1x128xf32>
    %2 = vector.broadcast %1 : vector<1x128xf32> to vector<16x128xf32>
    %3 = arith.mulf %0, %2 : vector<16x128xf32>
    %c0_3 = arith.constant 0 : index
    %c0_4 = arith.constant 0 : index
    %4 = vector.load %arg3[%c0_3, %c0_4] : memref<1x128xf32, #tpu.memory_space<vmem>>, vector<1x128xf32>
    %5 = vector.broadcast %4 : vector<1x128xf32> to vector<16x128xf32>
    %6 = arith.addf %3, %5 : vector<16x128xf32>
    %cst = arith.constant 0.000000e+00 : f32
    %7 = vector.broadcast %cst : f32 to vector<16x128xf32>
    %8 = arith.maximumf %6, %7 : vector<16x128xf32>
    %9 = arith.truncf %8 : vector<16x128xf32> to vector<16x128xbf16>
    %c0_5 = arith.constant 0 : index
    %c0_6 = arith.constant 0 : index
    %10 = vector.load %arg4[%c0_5, %c0_6] : memref<128x256xbf16, #tpu.memory_space<vmem>>, vector<128x256xbf16>
    %cst_7 = arith.constant dense<0.000000e+00> : vector<16x256xf32>
    %11 = tpu.matmul %9, %10, %cst_7 {dimension_numbers = #tpu.dot_dimension_numbers<[1], [0], [0], [1], [0, 0, 1, 1], [], []>} : vector<16x128xbf16>, vector<128x256xbf16>, vector<16x256xf32> -> vector<16x256xf32>
    %c0_8 = arith.constant 0 : index
    %c0_9 = arith.constant 0 : index
    %12 = vector.load %arg5[%c0_8, %c0_9] : memref<1x256xf32, #tpu.memory_space<vmem>>, vector<1x256xf32>
    %13 = vector.broadcast %12 : vector<1x256xf32> to vector<16x256xf32>
    %14 = arith.addf %11, %13 : vector<16x256xf32>
    %c0_10 = arith.constant 0 : index
    %c0_11 = arith.constant 0 : index
    %15 = vector.load %arg6[%c0_10, %c0_11] : memref<16x256xf32, #tpu.memory_space<vmem>>, vector<16x256xf32>
    tpu.vector_store %arg6[%c0_10, %c0_11], %14 {strides = array<i32>} : memref<16x256xf32, #tpu.memory_space<vmem>>, vector<16x256xf32>,
    return
  }
  func.func @transform_0(%arg0: i32) -> (i32, i32) {
    %c0_i32 = arith.constant 0 : i32
    %c0_i32_0 = arith.constant 0 : i32
    return %arg0, %c0_i32 : i32, i32
  }
  func.func @transform_1(%arg0: i32) -> (i32, i32) {
    %c0_i32 = arith.constant 0 : i32
    %c0_i32_0 = arith.constant 0 : i32
    %c0_i32_1 = arith.constant 0 : i32
    return %c0_i32, %c0_i32_0 : i32, i32
  }
  func.func @transform_2(%arg0: i32) -> (i32, i32) {
    %c0_i32 = arith.constant 0 : i32
    %c0_i32_0 = arith.constant 0 : i32
    %c0_i32_1 = arith.constant 0 : i32
    return %c0_i32, %c0_i32_0 : i32, i32
  }
  func.func @transform_3(%arg0: i32) -> (i32, i32) {
    %c0_i32 = arith.constant 0 : i32
    %c0_i32_0 = arith.constant 0 : i32
    %c0_i32_1 = arith.constant 0 : i32
    return %c0_i32, %c0_i32_0 : i32, i32
  }
  func.func @transform_4(%arg0: i32) -> (i32, i32) {
    %c0_i32 = arith.constant 0 : i32
    %c0_i32_0 = arith.constant 0 : i32
    %c0_i32_1 = arith.constant 0 : i32
    return %c0_i32, %c0_i32_0 : i32, i32
  }
  func.func @transform_5(%arg0: i32) -> (i32, i32) {
    %c0_i32 = arith.constant 0 : i32
    %c0_i32_0 = arith.constant 0 : i32
    return %arg0, %c0_i32 : i32, i32
  }
}

</mosaic_0001>

<llo_original>
// kernel: tpu_custom_call.1
$region0: #{tpu_custom_call.1}
  #allocation0 [shape = 'u32[]', space=smem, size = 0x4, offset = 0x4, fixed_abs, tag = 'smem constant byte address 0x4 - core index']
  #allocation1 [shape = 'u32[72,128]{1,0:T(1,128)}', space=vmem, size = 0x9000, scoped, tag = 'internal scratch']
  %s0 = inlined_call_operand.hbm [shape: f32[64,128], index: 0, kind: input, shape index: {}]
  %s1 = inlined_call_operand.hbm [shape: f32[1,128], index: 1, kind: input, shape index: {}]
  %s2 = inlined_call_operand.vmem [shape: f32[1,128], index: 2, kind: input, shape index: {}]
  %s3 = inlined_call_operand.hbm [shape: bf16[128,256], index: 3, kind: input, shape index: {}]
  %s4 = inlined_call_operand.vmem [shape: f32[1,256], index: 4, kind: input, shape index: {}]
  %s5 = inlined_call_operand.hbm [shape: f32[64,256], index: 5, kind: output, shape index: {}]
  %s6 = sld [smem:[#allocation0]]
  $region65: #{tpu_custom_call.1} parent=0
    _
  %s8 = ssub.s32 1, %s6
  %s9 = scalar_select 0, %s8, %s6
  $region1: #{tpu_custom_call.1} parent=0
    #allocation2 [shape = 'u8[16384]{0}', space=vmem, size = 0x4000, scoped, tag = 'input window, operand 0']
    #allocation3 [shape = 's32[2]{0}', space=sflag, size = 0x8, scoped, tag = 'scoped memory for tpu_custom_call.1']
    #allocation4 [shape = 's32[2]{0}', space=sflag, size = 0x8, scoped, tag = 'scoped memory for tpu_custom_call.1']
    #allocation5 [shape = 'u8[512]{0}', space=vmem, size = 0x400, scoped, tag = 'input window, operand 1, single buffered']
    #allocation6 [shape = 's32[1]{0}', space=sflag, size = 0x4, scoped, tag = 'scoped memory for tpu_custom_call.1']
    #allocation7 [shape = 'u8[65536]{0}', space=vmem, size = 0x10000, scoped, tag = 'input window, operand 3, single buffered']
    #allocation8 [shape = 'u8[32768]{0}', space=vmem, size = 0x8000, scoped, tag = 'output window, operand 0']
    %10 = vsyncpa [#allocation3], 0
    %s11 = scalar_lea.sflag [#allocation3], 1
    %12 = vsyncpa %s11, 0
    %13 = vsyncpa [#allocation6], 0
    %14 = vsyncpa [#allocation4], 0
    %s15 = scalar_lea.sflag [#allocation4], 1
    %16 = vsyncpa %s15, 0
    loop: start=0, step=1, limit=6
    $region2: #{tpu_custom_call.1} parent=1 // loop_pre_header
      _
    $region3: #{tpu_custom_call.1} parent=1 // loop_header
      %s18 = sphi 0, %s22
      %p19 = scmp.ge.s32.totalorder %s18, 6
      %s28 = sphi 0, %s30
      %s31 = sphi 0, %s28
      %s32 = sphi 0, %s31
      %s48 = sphi 0, %s32
      %s52 = sphi 0, %s52
      %s54 = sphi 0, %s52
      %s55 = sphi 0, %s54
      %s69 = sphi 0, %s55
      %s73 = sphi 0, %s73
      %s75 = sphi 0, %s73
      %s76 = sphi 0, %s75
      %s90 = sphi 0, %s76
      %s94 = sphi 0, %s94
      %s96 = sphi 0, %s94
      %s97 = sphi 0, %s96
      %s111 = sphi 0, %s97
      %s115 = sphi 0, %s115
      %s117 = sphi 0, %s115
      %s118 = sphi 0, %s117
      %s132 = sphi 0, %s118
      %s138 = sphi 0, %s140
      %s141 = sphi 0, %s138
      %s142 = sphi 0, %s141
      %s158 = sphi 0, %s142
    $region4: #{tpu_custom_call.1} parent=1 // loop_header_branch
      %21 = sbr.rel (%p19) target = $region8
    $region5: #{tpu_custom_call.1} parent=1 // loop_body
      %s23 = ssub.s32 %s18, 1
      %s24 = ssub.s32 %s18, 2
      %s25 = sadd.s32 %s18, 1
      %s26 = ssub.s32 %s18, %s25
      %p27 = scmp.eq.s32.totalorder %s26, 0
      %s29 = sadd.s32 %s28, 1
      %s30 = scalar_select %p27, %s28, %s29
      %p33 = pneg %p27
      %p34 = scmp.eq.s32.totalorder %s18, 3
      %p35 = por %p33, %p34
      %p36 = scmp.ne.s32.totalorder %s28, %s31
      %p37 = scmp.eq.s32.totalorder %s18, 0
      %p38 = por %p36, %p37
      %p39 = scmp.ne.s32.totalorder %s28, %s31
      %p40 = scmp.eq.s32.totalorder %s23, 3
      %p41 = por %p39, %p40
      %p42 = scmp.ne.s32.totalorder %s31, %s32
      %p43 = scmp.eq.s32.totalorder %s23, 0
      %p44 = por %p42, %p43
      %p45 = scmp.ne.s32.totalorder %s31, %s32
      %p46 = scmp.eq.s32.totalorder %s24, 3
      %p47 = por %p45, %p46
      %p49 = scmp.ne.s32.totalorder %s32, %s48
      %p50 = scmp.eq.s32.totalorder %s24, 0
      %p51 = por %p49, %p50
      %s53 = sadd.s32 %s52, 1
      %p56 = scmp.eq.s32.totalorder %s18, 3
      %p57 = scmp.ne.s32.totalorder %s52, %s54
      %p58 = scmp.eq.s32.totalorder %s18, 0
      %p59 = por %p57, %p58
      %p60 = scmp.ne.s32.totalorder %s52, %s54
      %p61 = scmp.eq.s32.totalorder %s23, 3
      %p62 = por %p60, %p61
      %p63 = scmp.ne.s32.totalorder %s54, %s55
      %p64 = scmp.eq.s32.totalorder %s23, 0
      %p65 = por %p63, %p64
      %p66 = scmp.ne.s32.totalorder %s54, %s55
      %p67 = scmp.eq.s32.totalorder %s24, 3
      %p68 = por %p66, %p67
      %p70 = scmp.ne.s32.totalorder %s55, %s69
      %p71 = scmp.eq.s32.totalorder %s24, 0
      %p72 = por %p70, %p71
      %s74 = sadd.s32 %s73, 1
      %p77 = scmp.eq.s32.totalorder %s18, 3
      %p78 = scmp.ne.s32.totalorder %s73, %s75
      %p79 = scmp.eq.s32.totalorder %s18, 0
      %p80 = por %p78, %p79
      %p81 = scmp.ne.s32.totalorder %s73, %s75
      %p82 = scmp.eq.s32.totalorder %s23, 3
      %p83 = por %p81, %p82
      %p84 = scmp.ne.s32.totalorder %s75, %s76
      %p85 = scmp.eq.s32.totalorder %s23, 0
      %p86 = por %p84, %p85
      %p87 = scmp.ne.s32.totalorder %s75, %s76
      %p88 = scmp.eq.s32.totalorder %s24, 3
      %p89 = por %p87, %p88
      %p91 = scmp.ne.s32.totalorder %s76, %s90
      %p92 = scmp.eq.s32.totalorder %s24, 0
      %p93 = por %p91, %p92
      %s95 = sadd.s32 %s94, 1
      %p98 = scmp.eq.s32.totalorder %s18, 3
      %p99 = scmp.ne.s32.totalorder %s94, %s96
      %p100 = scmp.eq.s32.totalorder %s18, 0
      %p101 = por %p99, %p100
      %p102 = scmp.ne.s32.totalorder %s94, %s96
      %p103 = scmp.eq.s32.totalorder %s23, 3
      %p104 = por %p102, %p103
      %p105 = scmp.ne.s32.totalorder %s96, %s97
      %p106 = scmp.eq.s32.totalorder %s23, 0
      %p107 = por %p105, %p106
      %p108 = scmp.ne.s32.totalorder %s96, %s97
      %p109 = scmp.eq.s32.totalorder %s24, 3
      %p110 = por %p108, %p109
      %p112 = scmp.ne.s32.totalorder %s97, %s111
      %p113 = scmp.eq.s32.totalorder %s24, 0
      %p114 = por %p112, %p113
      %s116 = sadd.s32 %s115, 1
      %p119 = scmp.eq.s32.totalorder %s18, 3
      %p120 = scmp.ne.s32.totalorder %s115, %s117
      %p121 = scmp.eq.s32.totalorder %s18, 0
      %p122 = por %p120, %p121
      %p123 = scmp.ne.s32.totalorder %s115, %s117
      %p124 = scmp.eq.s32.totalorder %s23, 3
      %p125 = por %p123, %p124
      %p126 = scmp.ne.s32.totalorder %s117, %s118
      %p127 = scmp.eq.s32.totalorder %s23, 0
      %p128 = por %p126, %p127
      %p129 = scmp.ne.s32.totalorder %s117, %s118
      %p130 = scmp.eq.s32.totalorder %s24, 3
      %p131 = por %p129, %p130
      %p133 = scmp.ne.s32.totalorder %s118, %s132
      %p134 = scmp.eq.s32.totalorder %s24, 0
      %p135 = por %p133, %p134
      %s136 = ssub.s32 %s18, %s25
      %p137 = scmp.eq.s32.totalorder %s136, 0
      %s139 = sadd.s32 %s138, 1
      %s140 = scalar_select %p137, %s138, %s139
      %p143 = pneg %p137
      %p144 = scmp.eq.s32.totalorder %s18, 3
      %p145 = por %p143, %p144
      %p146 = scmp.ne.s32.totalorder %s138, %s141
      %p147 = scmp.eq.s32.totalorder %s18, 0
      %p148 = por %p146, %p147
      %p149 = scmp.ne.s32.totalorder %s138, %s141
      %p150 = scmp.eq.s32.totalorder %s23, 3
      %p151 = por %p149, %p150
      %p152 = scmp.ne.s32.totalorder %s141, %s142
      %p153 = scmp.eq.s32.totalorder %s23, 0
      %p154 = por %p152, %p153
      %p155 = scmp.ne.s32.totalorder %s141, %s142
      %p156 = scmp.eq.s32.totalorder %s24, 3
      %p157 = por %p155, %p156
      %p159 = scmp.ne.s32.totalorder %s142, %s158
      %p160 = scmp.eq.s32.totalorder %s24, 0
      %p161 = por %p159, %p160
      %p162 = scmp.le.s32.totalorder 1, %s18
      %p163 = scmp.lt.s32.totalorder %s18, 5
      %p164 = pnand %p162, %p163
      %p165 = pneg %p164
      // Predicated region
      $region9: #{tpu_custom_call.1} parent=5 // pred_check
        _
      $region10: #{tpu_custom_call.1} parent=5 // pred_check_branch
        %167 = sbr.rel (%p164) target = $region12
      $region11: #{tpu_custom_call.1} parent=5 // pred_region
        %s168 = ssub.s32 %s18, 1
        // Predicated region
        $region13: #{tpu_custom_call.1} parent=11 // pred_check
          %p169 = pneg %p65
        $region14: #{tpu_custom_call.1} parent=11 // pred_check_branch
          %171 = sbr.rel (%p169) target = $region16
        $region15: #{tpu_custom_call.1} parent=11 // pred_region
          %173 = vsyncadd [#allocation6], 0
          %s175 = sshll.u32 %s1, 4
          %s176 = int_to_ptr.hbm [resolvable:$true] %s175
          %s177 = sshll.u32 [#allocation5], 4
          %s178 = int_to_ptr.vmem [resolvable:$true] %s177
          %180 = dma.hbm_to_vmem [thread:$0]  %s176, 16, %s178, [#allocation6]
        $region16: #{tpu_custom_call.1} parent=11 // pred_fallthru
          _
        // Predicated region
        $region17: #{tpu_custom_call.1} parent=11 // pred_check
          %p181 = pneg %p86
        $region18: #{tpu_custom_call.1} parent=11 // pred_check_branch
          %183 = sbr.rel (%p181) target = $region20
        $region19: #{tpu_custom_call.1} parent=11 // pred_region
          _
        $region20: #{tpu_custom_call.1} parent=11 // pred_fallthru
          _
        // Predicated region
        $region21: #{tpu_custom_call.1} parent=11 // pred_check
          %p184 = pneg %p107
        $region22: #{tpu_custom_call.1} parent=11 // pred_check_branch
          %186 = sbr.rel (%p184) target = $region24
        $region23: #{tpu_custom_call.1} parent=11 // pred_region
          %188 = vsyncadd [#allocation6], 0
          %s189 = sshll.u32 %s3, 4
          %s190 = int_to_ptr.hbm [resolvable:$true] %s189
          %s191 = sshll.u32 [#allocation7], 4
          %s192 = int_to_ptr.vmem [resolvable:$true] %s191
          %197 = dma.hbm_to_vmem [thread:$0]  %s190, 2048, %s192, [#allocation6], 128, 128, 8
        $region24: #{tpu_custom_call.1} parent=11 // pred_fallthru
          _
        // Predicated region
        $region25: #{tpu_custom_call.1} parent=11 // pred_check
          %p198 = pneg %p128
        $region26: #{tpu_custom_call.1} parent=11 // pred_check_branch
          %200 = sbr.rel (%p198) target = $region28
        $region27: #{tpu_custom_call.1} parent=11 // pred_region
          _
        $region28: #{tpu_custom_call.1} parent=11 // pred_fallthru
          _
      $region12: #{tpu_custom_call.1} parent=5 // pred_fallthru
        _
      %p201 = scmp.lt.s32.totalorder %s18, 4
      // Predicated region
      $region29: #{tpu_custom_call.1} parent=5 // pred_check
        %p202 = pneg %p201
      $region30: #{tpu_custom_call.1} parent=5 // pred_check_branch
        %204 = sbr.rel (%p202) target = $region32
      $region31: #{tpu_custom_call.1} parent=5 // pred_region
        // Predicated region
        $region33: #{tpu_custom_call.1} parent=31 // pred_check
          %p205 = pneg %p38
        $region34: #{tpu_custom_call.1} parent=31 // pred_check_branch
          %207 = sbr.rel (%p205) target = $region36
        $region35: #{tpu_custom_call.1} parent=31 // pred_region
          %s208 = sand.u32 %s28, 1
          %s209 = scalar_lea.sflag [#allocation3], %s208
          %s210 = sand.u32 %s28, 1
          %s211 = smul.addr %s210, 16
          %s212 = scalar_lea.vmem [#allocation2], %s211
          %s213 = smul.u32 2, %s18
          %215 = vsyncadd %s209, 0
          %s216 = smul.addr %s213, 8
          %s217 = scalar_lea.hbm %s0, %s216
          %s218 = sshll.u32 %s217, 4
          %s219 = int_to_ptr.hbm [resolvable:$true] %s218
          %s220 = sshll.u32 %s212, 4
          %s221 = int_to_ptr.vmem [resolvable:$true] %s220
          %226 = dma.hbm_to_vmem [thread:$0]  %s219, 256, %s221, %s209, 128, 128, 8
        $region36: #{tpu_custom_call.1} parent=31 // pred_fallthru
          _
      $region32: #{tpu_custom_call.1} parent=5 // pred_fallthru
        _
      %p227 = scmp.le.s32.totalorder 1, %s18
      %p228 = scmp.lt.s32.totalorder %s18, 5
      %p229 = pnand %p227, %p228
      %p230 = pneg %p229
      // Predicated region
      $region37: #{tpu_custom_call.1} parent=5 // pred_check
        _
      $region38: #{tpu_custom_call.1} parent=5 // pred_check_branch
        %232 = sbr.rel (%p229) target = $region40
      $region39: #{tpu_custom_call.1} parent=5 // pred_region
        %s233 = ssub.s32 %s18, 1
        %s234 = sand.u32 %s31, 1
        %s235 = scalar_lea.sflag [#allocation3], %s234
        %s236 = sand.u32 %s31, 1
        %s237 = smul.addr %s236, 16
        %s238 = scalar_lea.vmem [#allocation2], %s237
        // Predicated region
        $region41: #{tpu_custom_call.1} parent=39 // pred_check
          %p239 = pneg %p44
        $region42: #{tpu_custom_call.1} parent=39 // pred_check_branch
          %241 = sbr.rel (%p239) target = $region44
        $region43: #{tpu_custom_call.1} parent=39 // pred_region
          %243 = dma.done %s235, 256
        $region44: #{tpu_custom_call.1} parent=39 // pred_fallthru
          _
        // Predicated region
        $region45: #{tpu_custom_call.1} parent=39 // pred_check
          %p244 = pneg %p65
        $region46: #{tpu_custom_call.1} parent=39 // pred_check_branch
          %246 = sbr.rel (%p244) target = $region48
        $region47: #{tpu_custom_call.1} parent=39 // pred_region
          %248 = dma.done [#allocation6], 16
        $region48: #{tpu_custom_call.1} parent=39 // pred_fallthru
          _
        // Predicated region
        $region49: #{tpu_custom_call.1} parent=39 // pred_check
          %p249 = pneg %p107
        $region50: #{tpu_custom_call.1} parent=39 // pred_check_branch
          %251 = sbr.rel (%p249) target = $region52
        $region51: #{tpu_custom_call.1} parent=39 // pred_region
          %253 = dma.done [#allocation6], 2048
        $region52: #{tpu_custom_call.1} parent=39 // pred_fallthru
          _
        %s254 = sand.u32 %s31, 1
        %s255 = scalar_lea.sflag [#allocation3], %s254
        %s256 = sand.u32 %s31, 1
        %s257 = smul.addr %s256, 16
        %s258 = scalar_lea.vmem [#allocation2], %s257
        %p259 = pneg %p44
        %p260 = pneg %p41
        %p261 = pneg %p65
        %p262 = pneg %p62
        %p263 = pneg %p86
        %p264 = pneg %p83
        %p265 = pneg %p107
        %p266 = pneg %p104
        %p267 = pneg %p128
        %p268 = pneg %p125
        %p269 = pneg %p154
        %p270 = pneg %p151
        %s271 = sand.u32 %s141, 1
        %s272 = scalar_lea.sflag [#allocation4], %s271
        %s273 = sand.u32 %s141, 1
        %s274 = smul.addr %s273, 32
        %s275 = scalar_lea.vmem [#allocation8], %s274
        %s276 = smul.u32 2, %s23
        %s277 = smul.u32 2, %s23
        %v278 = vld [vmem:[%s238] sm:$0xff]
        %v279 = vld [vmem:[%s238 + $0x8] sm:$0xff]
        %v280 = vld [vmem:[#allocation5] sm:$0x1]
        %v282 = vperm.slane %v280, 0
        %v284 = vmul.f32 %v278, %v282
        %v285 = vmul.f32 %v279, %v282
        %v286 = vld [vmem:[%s2] sm:$0x1]
        %v288 = vperm.slane %v286, 0
        %v290 = vadd.f32 %v284, %v288
        %v291 = vadd.f32 %v285, %v288
        %v292 = vmax.f32 %v290, 0.0
        %v293 = vmax.f32 %v291, 0.0
        %v294 = vpack.c.bf16 %v293, %v292
        %v295 = vld [vmem:[#allocation7] sm:$0xff]
        %v296 = vld [vmem:[#allocation7 + $0x8] sm:$0xff]
        %v297 = vld [vmem:[#allocation7 + $0x10] sm:$0xff]
        %v298 = vld [vmem:[#allocation7 + $0x18] sm:$0xff]
        %v299 = vld [vmem:[#allocation7 + $0x20] sm:$0xff]
        %v300 = vld [vmem:[#allocation7 + $0x28] sm:$0xff]
        %v301 = vld [vmem:[#allocation7 + $0x30] sm:$0xff]
        %v302 = vld [vmem:[#allocation7 + $0x38] sm:$0xff]
        %v303 = vld [vmem:[#allocation7 + $0x40] sm:$0xff]
        %v304 = vld [vmem:[#allocation7 + $0x48] sm:$0xff]
        %v305 = vld [vmem:[#allocation7 + $0x50] sm:$0xff]
        %v306 = vld [vmem:[#allocation7 + $0x58] sm:$0xff]
        %v307 = vld [vmem:[#allocation7 + $0x60] sm:$0xff]
        %v308 = vld [vmem:[#allocation7 + $0x68] sm:$0xff]
        %v309 = vld [vmem:[#allocation7 + $0x70] sm:$0xff]
        %v310 = vld [vmem:[#allocation7 + $0x78] sm:$0xff]
        %v311 = vld [vmem:[%s4] sm:$0x3]
        %v313 = vperm.slane %v311, 0
        %v314 = vperm.slane %v311, 1
        %v333 = vunpack.c.l.b16 %v295
        %v334 = vunpack.c.h.b16 %v295
        %v335 = vunpack.c.l.b16 %v296
        %v336 = vunpack.c.h.b16 %v296
        %v337 = vunpack.c.l.b16 %v297
        %v338 = vunpack.c.h.b16 %v297
        %v339 = vunpack.c.l.b16 %v298
        %v340 = vunpack.c.h.b16 %v298
        %v341 = vunpack.c.l.b16 %v299
        %v342 = vunpack.c.h.b16 %v299
        %v343 = vunpack.c.l.b16 %v300
        %v344 = vunpack.c.h.b16 %v300
        %v345 = vunpack.c.l.b16 %v301
        %v346 = vunpack.c.h.b16 %v301
        %v347 = vunpack.c.l.b16 %v302
        %v348 = vunpack.c.h.b16 %v302
        %v349 = vunpack.c.l.b16 %v303
        %v350 = vunpack.c.h.b16 %v303
        %v351 = vunpack.c.l.b16 %v304
        %v352 = vunpack.c.h.b16 %v304
        %v353 = vunpack.c.l.b16 %v305
        %v354 = vunpack.c.h.b16 %v305
        %v355 = vunpack.c.l.b16 %v306
        %v356 = vunpack.c.h.b16 %v306
        %v357 = vunpack.c.l.b16 %v307
        %v358 = vunpack.c.h.b16 %v307
        %v359 = vunpack.c.l.b16 %v308
        %v360 = vunpack.c.h.b16 %v308
        %v361 = vunpack.c.l.b16 %v309
        %v362 = vunpack.c.h.b16 %v309
        %v363 = vunpack.c.l.b16 %v310
        %v364 = vunpack.c.h.b16 %v310
        %v365 = vpack.c.b16 %v335, %v333
        %v366 = vpack.c.b16 %v336, %v334
        %v367 = vpack.c.b16 %v339, %v337
        %v368 = vpack.c.b16 %v340, %v338
        %v369 = vpack.c.b16 %v343, %v341
        %v370 = vpack.c.b16 %v344, %v342
        %v371 = vpack.c.b16 %v347, %v345
        %v372 = vpack.c.b16 %v348, %v346
        %v373 = vpack.c.b16 %v351, %v349
        %v374 = vpack.c.b16 %v352, %v350
        %v375 = vpack.c.b16 %v355, %v353
        %v376 = vpack.c.b16 %v356, %v354
        %v377 = vpack.c.b16 %v359, %v357
        %v378 = vpack.c.b16 %v360, %v358
        %v379 = vpack.c.b16 %v363, %v361
        %v380 = vpack.c.b16 %v364, %v362
        %397 = vmatpush.bf16.msra.mxu0 %v379
        %398 = vmatpush.bf16.msra.mxu0 %v377
        %399 = vmatpush.bf16.msra.mxu0 %v375
        %400 = vmatpush.bf16.msra.mxu0 %v373
        %401 = vmatpush.bf16.msra.mxu0 %v371
        %402 = vmatpush.bf16.msra.mxu0 %v369
        %403 = vmatpush.bf16.msra.mxu0 %v367
        %404 = vmatpush.bf16.msra.mxu0 %v365
        %405 = vmatmul.bf16.gmra.mxu0 %v294
        %v406 = vpop.f32.mrf.mxu0
        %v407 = vadd.f32 %v313, %v406
        %v408 = vpop.f32.mrf.mxu0
        %v409 = vadd.f32 %v313, %v408
        %410 = vdwg.mxu0
        %411 = vmatpush.bf16.msra.mxu0 %v380
        %412 = vmatpush.bf16.msra.mxu0 %v378
        %413 = vmatpush.bf16.msra.mxu0 %v376
        %414 = vmatpush.bf16.msra.mxu0 %v374
        %415 = vmatpush.bf16.msra.mxu0 %v372
        %416 = vmatpush.bf16.msra.mxu0 %v370
        %417 = vmatpush.bf16.msra.mxu0 %v368
        %418 = vmatpush.bf16.msra.mxu0 %v366
        %419 = vmatmul.bf16.gmra.mxu0 %v294
        %v420 = vpop.f32.mrf.mxu0
        %v421 = vadd.f32 %v314, %v420
        %v422 = vpop.f32.mrf.mxu0
        %v423 = vadd.f32 %v314, %v422
        %424 = vdwg.mxu0
        %425 = vst [vmem:[%s275] sm:$0xff] %v407
        %426 = vst [vmem:[%s275 + $0x8] sm:$0xff] %v421
        %427 = vst [vmem:[%s275 + $0x10] sm:$0xff] %v409
        %428 = vst [vmem:[%s275 + $0x18] sm:$0xff] %v423
        %s429 = sand.u32 %s141, 1
        %s430 = scalar_lea.sflag [#allocation4], %s429
        %s431 = sand.u32 %s141, 1
        %s432 = smul.addr %s431, 32
        %s433 = scalar_lea.vmem [#allocation8], %s432
        // Predicated region
        $region53: #{tpu_custom_call.1} parent=39 // pred_check
          %p434 = pneg %p151
        $region54: #{tpu_custom_call.1} parent=39 // pred_check_branch
          %436 = sbr.rel (%p434) target = $region56
        $region55: #{tpu_custom_call.1} parent=39 // pred_region
          %s437 = smul.u32 2, %s23
          %439 = vsyncadd %s430, 0
          %s440 = smul.addr %s437, 2
          %s441 = smul.addr %s440, 8
          %s442 = scalar_lea.hbm %s5, %s441
          %s443 = sshll.u32 %s433, 4
          %s444 = int_to_ptr.vmem [resolvable:$true] %s443
          %s445 = sshll.u32 %s442, 4
          %s446 = int_to_ptr.hbm [resolvable:$true] %s445
          %451 = dma.vmem_to_hbm [thread:$0]  %s444, 512, %s446, %s430, 256, 256, 16
        $region56: #{tpu_custom_call.1} parent=39 // pred_fallthru
          _
      $region40: #{tpu_custom_call.1} parent=5 // pred_fallthru
        _
      %p452 = scmp.le.s32.totalorder 2, %s18
      // Predicated region
      $region57: #{tpu_custom_call.1} parent=5 // pred_check
        %p453 = pneg %p452
      $region58: #{tpu_custom_call.1} parent=5 // pred_check_branch
        %455 = sbr.rel (%p453) target = $region60
      $region59: #{tpu_custom_call.1} parent=5 // pred_region
        %s456 = ssub.s32 %s18, 2
        // Predicated region
        $region61: #{tpu_custom_call.1} parent=59 // pred_check
          %p457 = pneg %p157
        $region62: #{tpu_custom_call.1} parent=59 // pred_check_branch
          %459 = sbr.rel (%p457) target = $region64
        $region63: #{tpu_custom_call.1} parent=59 // pred_region
          %s460 = sand.u32 %s142, 1
          %s461 = scalar_lea.sflag [#allocation4], %s460
          %s462 = sand.u32 %s142, 1
          %s463 = smul.addr %s462, 32
          %s464 = scalar_lea.vmem [#allocation8], %s463
          %466 = dma.done %s461, 512
        $region64: #{tpu_custom_call.1} parent=59 // pred_fallthru
          _
      $region60: #{tpu_custom_call.1} parent=5 // pred_fallthru
        _
    $region6: #{tpu_custom_call.1} parent=1 // loop_footer
      %s22 = sadd.s32 1, %s18
    $region7: #{tpu_custom_call.1} parent=1 // loop_footer_branch
      %17 = sbr.rel target = $region3
    $region8: #{tpu_custom_call.1} parent=1 // loop_exit
      _
    %467 = vsyncpa [#allocation3], 1
    %s468 = scalar_lea.sflag [#allocation3], 1
    %469 = vsyncpa %s468, 1
    %470 = vsyncpa [#allocation6], 1
    %471 = vsyncpa [#allocation4], 1
    %s472 = scalar_lea.sflag [#allocation4], 1
    %473 = vsyncpa %s472, 1

</llo_original>
